<compile_context>
chip_gen: v6e
topology: v6e:2x2x1
jax: 0.10.0
libtpu: 0.0.40
codegen_flags: <defaults>
</compile_context>

<pallas_src>
import math
import functools

import jax
import jax.numpy as jnp
from jax import lax
from jax.experimental import pallas as pl
from jax.experimental.pallas import tpu as pltpu


# ---------------------------------------------------------------------------
# Pallas kernel: one batch element per grid step.
# ---------------------------------------------------------------------------
def _memory_kernel(sum_ref, h_ref, qk_ref, ws_ref, wv_ref, gmem_ref, gh_ref,
                   o_ref, *, eps, scale):
    summary = sum_ref[0]                                    # (n_win, dim*summary_len)

    # ws projection (MXU, f32 accumulation)
    s = jnp.dot(summary, ws_ref[...],
                preferred_element_type=jnp.float32)         # (n_win, md)

    # scores = (q @ Wk) @ s^T  — contraction on last dims, no transpose materialized
    scores = lax.dot_general(qk_ref[...], s, (((1,), (1,)), ((), ())),
                             preferred_element_type=jnp.float32) * scale   # (ms, n_win)

    # f32 softmax over the window axis. Exact division: the approx (bf16) reciprocal
    # previously used here was the source of the correctness mismatch, and the
    # denominator is only (memory_size, 1) so exactness costs nothing.
    scores = scores - jnp.max(scores, axis=-1, keepdims=True)
    p = jnp.exp(scores)
    p = p / jnp.sum(p, axis=-1, keepdims=True)

    # memory = p @ (s @ Wv^T) reassociated as (p @ s) @ Wv^T:
    # since memory_size << n_win in general, the value projection now costs
    # ms*md^2 instead of n_win*md^2.
    ps = jnp.dot(p, s, preferred_element_type=jnp.float32)                 # (ms, md)
    memory = jnp.dot(ps, wv_ref[...], preferred_element_type=jnp.float32)  # (ms, md)

    # RMSNorm over the full (memory_size, memory_dim) block, matching
    # nn.RMSNorm((memory_size, memory_dim)) which normalizes over both dims jointly.
    def rms2d(t, g):
        mean_sq = jnp.mean(t * t, keepdims=True)            # (1, 1)
        return t * lax.rsqrt(mean_sq + eps) * g

    h_new = h_ref[0] + rms2d(memory, gmem_ref[...])
    o_ref[0] = rms2d(h_new, gh_ref[...]).astype(o_ref.dtype)


# ---------------------------------------------------------------------------
# Wrapper: framing (pure layout) + one-time weight prep + pallas_call.
# ---------------------------------------------------------------------------
def _build_summary(x, *, summary_len, stride):
    """Zero-pad and extract strided windows, flattened to (B, n_win, dim*summary_len)."""
    B, seqlen, dim = x.shape
    conv_seqlen = seqlen + stride - (seqlen - summary_len) % stride
    n_win = (conv_seqlen - summary_len) // stride + 1
    seq = jnp.zeros((B, conv_seqlen, dim), x.dtype).at[:, :seqlen].set(x)
    windows = jnp.stack(
        [seq[:, i * stride:i * stride + summary_len] for i in range(n_win)], axis=1)
    return windows.reshape(B, n_win, summary_len * dim), n_win


def memory_forward(x, h, q, ws_w, wk_w, wv_w, g_mem, g_h,
                   *, summary_len, stride, memory_size, memory_dim, eps):
    """x: (B, S, dim); h: (B, memory_size, memory_dim).
    q: (memory_size, memory_dim) constant query (ConstQAtt.q).
    ws_w: (memory_dim, dim*summary_len), wk_w/wv_w: (memory_dim, memory_dim)
    (nn.Linear weight layout, i.e. (out, in)); g_mem/g_h: RMSNorm gains."""
    B, seqlen, dim = x.shape
    dsl = dim * summary_len

    summary_flat, n_win = _build_summary(x, summary_len=summary_len, stride=stride)

    # One-time host-side weight prep:
    ws_t = ws_w.T                       # (dsl, md)  -> kernel does plain x @ W
    wv_t = wv_w.T                       # (md, md)
    qk = q @ wk_w                       # (ms, md): q @ xk^T == (q @ Wk) @ s^T

    kernel = functools.partial(_memory_kernel, eps=eps,
                               scale=1.0 / math.sqrt(memory_dim))

    return pl.pallas_call(
        kernel,
        out_shape=jax.ShapeDtypeStruct((B, memory_size, memory_dim), h.dtype),
        grid=(B,),
        in_specs=[
            pl.BlockSpec((1, n_win, dsl), lambda b: (b, 0, 0)),               # summary slab
            pl.BlockSpec((1, memory_size, memory_dim), lambda b: (b, 0, 0)),  # h slab
            pl.BlockSpec((memory_size, memory_dim), lambda b: (0, 0)),        # q @ Wk
            pl.BlockSpec((dsl, memory_dim), lambda b: (0, 0)),                # ws^T
            pl.BlockSpec((memory_dim, memory_dim), lambda b: (0, 0)),         # wv^T
            pl.BlockSpec((memory_size, memory_dim), lambda b: (0, 0)),        # memory_norm gain
            pl.BlockSpec((memory_size, memory_dim), lambda b: (0, 0)),        # h_norm gain
        ],
        out_specs=pl.BlockSpec((1, memory_size, memory_dim), lambda b: (b, 0, 0)),
        compiler_params=pltpu.CompilerParams(
            dimension_semantics=("parallel",),
            vmem_limit_bytes=32 * 1024 * 1024,   # explicit budget; tiny working set here
        ),
    )(summary_flat, h, qk, ws_t, wv_t, g_mem, g_h)


# ---------------------------------------------------------------------------
# Pure-JAX reference mirroring the PyTorch Memory.forward.
# Matmuls pinned to HIGHEST so the reference itself is full f32 on real TPUs.
# ---------------------------------------------------------------------------
def _reference(x, h, q, ws_w, wk_w, wv_w, g_mem, g_h,
               *, summary_len, stride, memory_dim, eps):
    hp = lax.Precision.HIGHEST
    summary, _ = _build_summary(x, summary_len=summary_len, stride=stride)
    s = jnp.einsum("bnf,df->bnd", summary, ws_w, precision=hp)   # ws(summary)
    xk = jnp.einsum("bnd,ed->bne", s, wk_w, precision=hp)        # ConstQAtt.wk
    xv = jnp.einsum("bnd,ed->bne", s, wv_w, precision=hp)        # ConstQAtt.wv
    scores = jnp.einsum("md,bnd->bmn", q, xk, precision=hp) / math.sqrt(memory_dim)
    p = jax.nn.softmax(scores.astype(jnp.float32), axis=-1).astype(q.dtype)
    memory = jnp.einsum("bmn,bnd->bmd", p, xv, precision=hp)

    def rms(t, g):
        mean_sq = jnp.mean(t * t, axis=(-2, -1), keepdims=True)
        return t / jnp.sqrt(mean_sq + eps) * g

    h_new = h + rms(memory, g_mem)
    return rms(h_new, g_h)


if __name__ == "__main__":
    # Small shapes consistent with the module.
    B, seqlen, dim = 2, 16, 32
    summary_len = 8
    stride = summary_len                 # module default: stride = summary_len
    memory_size = 4
    memory_dim = 32
    dsl = dim * summary_len
    eps = float(jnp.finfo(jnp.float32).eps)   # nn.RMSNorm default eps (finfo eps)

    key = jax.random.PRNGKey(0)
    kx, kh, kq, ks, kk, kv, kg1, kg2 = jax.random.split(key, 8)

    x = jax.random.normal(kx, (B, seqlen, dim), dtype=jnp.float32)
    h = jax.random.normal(kh, (B, memory_size, memory_dim), dtype=jnp.float32)

    # Parameters (nn.Linear-like scale; ConstQAtt.q ~ N(0,1); RMSNorm gains near 1).
    q = jax.random.normal(kq, (memory_size, memory_dim), dtype=jnp.float32)
    ws_w = jax.random.normal(ks, (memory_dim, dsl), dtype=jnp.float32) / math.sqrt(dsl)
    wk_w = jax.random.normal(kk, (memory_dim, memory_dim), dtype=jnp.float32) / math.sqrt(memory_dim)
    wv_w = jax.random.normal(kv, (memory_dim, memory_dim), dtype=jnp.float32) / math.sqrt(memory_dim)
    g_mem = 1.0 + 0.1 * jax.random.normal(kg1, (memory_size, memory_dim), dtype=jnp.float32)
    g_h = 1.0 + 0.1 * jax.random.normal(kg2, (memory_size, memory_dim), dtype=jnp.float32)

    out = memory_forward(x, h, q, ws_w, wk_w, wv_w, g_mem, g_h,
                         summary_len=summary_len, stride=stride,
                         memory_size=memory_size, memory_dim=memory_dim, eps=eps)
    out = jax.block_until_ready(out)

    ref = _reference(x, h, q, ws_w, wk_w, wv_w, g_mem, g_h,
                     summary_len=summary_len, stride=stride,
                     memory_dim=memory_dim, eps=eps)

    assert out.shape == (B, memory_size, memory_dim)
    # Remaining differences are matmul reassociation only (Wk folded into q, Wv applied
    # after the softmax contraction) — well inside this tolerance.
    assert jnp.allclose(out, ref, atol=2e-3, rtol=2e-3), "mismatch vs reference"

    print("KERNEL_OK")
</pallas_src>

<mosaic_0001>
module attributes {stable_mosaic.version = 11 : i64} {
  func.func @_memory_kernel(%arg0: i32, %arg1: memref<1x3x256xf32, #tpu.memory_space<vmem>>, %arg2: memref<1x4x32xf32, #tpu.memory_space<vmem>>, %arg3: memref<4x32xf32, #tpu.memory_space<vmem>>, %arg4: memref<256x32xf32, #tpu.memory_space<vmem>>, %arg5: memref<32x32xf32, #tpu.memory_space<vmem>>, %arg6: memref<4x32xf32, #tpu.memory_space<vmem>>, %arg7: memref<4x32xf32, #tpu.memory_space<vmem>>, %arg8: memref<1x4x32xf32, #tpu.memory_space<vmem>>) attributes {dimension_semantics = [#tpu.dimension_semantics<parallel>], iteration_bounds = array<i64: 2>, scalar_prefetch = 0 : i64, scratch_operands = 0 : i64, tpu.core_type = #tpu.core_type<tc>, window_params = [{transform_indices = @transform_0, window_bounds = array<i64: 1, 3, 256>}, {transform_indices = @transform_1, window_bounds = array<i64: 1, 4, 32>}, {pipeline_mode = #tpu.pipeline_mode<synchronous>, transform_indices = @transform_2, window_bounds = array<i64: 4, 32>}, {pipeline_mode = #tpu.pipeline_mode<synchronous>, transform_indices = @transform_3, window_bounds = array<i64: 256, 32>}, {pipeline_mode = #tpu.pipeline_mode<synchronous>, transform_indices = @transform_4, window_bounds = array<i64: 32, 32>}, {pipeline_mode = #tpu.pipeline_mode<synchronous>, transform_indices = @transform_5, window_bounds = array<i64: 4, 32>}, {pipeline_mode = #tpu.pipeline_mode<synchronous>, transform_indices = @transform_6, window_bounds = array<i64: 4, 32>}, {transform_indices = @transform_7, window_bounds = array<i64: 1, 4, 32>}]} {
    %c0 = arith.constant 0 : index
    %c0_0 = arith.constant 0 : index
    %c0_1 = arith.constant 0 : index
    %0 = vector.load %arg1[%c0, %c0_0, %c0_1] : memref<1x3x256xf32, #tpu.memory_space<vmem>>, vector<1x3x256xf32>
    %1 = vector.shape_cast %0 : vector<1x3x256xf32> to vector<3x256xf32>
    %c0_2 = arith.constant 0 : index
    %c0_3 = arith.constant 0 : index
    %2 = vector.load %arg4[%c0_2, %c0_3] : memref<256x32xf32, #tpu.memory_space<vmem>>, vector<256x32xf32>
    %cst = arith.constant dense<0.000000e+00> : vector<3x32xf32>
    %3 = tpu.matmul %1, %2, %cst {dimension_numbers = #tpu.dot_dimension_numbers<[1], [0], [0], [1], [0, 0, 1, 1], [], []>} : vector<3x256xf32>, vector<256x32xf32>, vector<3x32xf32> -> vector<3x32xf32>
    %c0_4 = arith.constant 0 : index
    %c0_5 = arith.constant 0 : index
    %4 = vector.load %arg3[%c0_4, %c0_5] : memref<4x32xf32, #tpu.memory_space<vmem>>, vector<4x32xf32>
    %cst_6 = arith.constant dense<0.000000e+00> : vector<4x3xf32>
    %5 = tpu.matmul %4, %3, %cst_6 {dimension_numbers = #tpu.dot_dimension_numbers<[1], [1], [0], [0], [0, 0, 1, 0], [], []>} : vector<4x32xf32>, vector<3x32xf32>, vector<4x3xf32> -> vector<4x3xf32>
    %cst_7 = arith.constant 0.176776692 : f32
    %6 = vector.broadcast %cst_7 : f32 to vector<4x3xf32>
    %7 = arith.mulf %5, %6 : vector<4x3xf32>
    %cst_8 = arith.constant dense<0xFF800000> : vector<4xf32>
    %8 = vector.multi_reduction <maximumf>, %7, %cst_8 [1] : vector<4x3xf32> to vector<4xf32>
    %9 = vector.shape_cast %8 : vector<4xf32> to vector<4x1xf32>
    %10 = vector.broadcast %9 : vector<4x1xf32> to vector<4x3xf32>
    %11 = arith.subf %7, %10 : vector<4x3xf32>
    %12 = math.exp %11 : vector<4x3xf32>
    %cst_9 = arith.constant dense<0.000000e+00> : vector<4xf32>
    %13 = vector.multi_reduction <add>, %12, %cst_9 [1] : vector<4x3xf32> to vector<4xf32>
    %14 = vector.shape_cast %13 : vector<4xf32> to vector<4x1xf32>
    %15 = vector.broadcast %14 : vector<4x1xf32> to vector<4x3xf32>
    %16 = arith.divf %12, %15 : vector<4x3xf32>
    %cst_10 = arith.constant dense<0.000000e+00> : vector<4x32xf32>
    %17 = tpu.matmul %16, %3, %cst_10 {dimension_numbers = #tpu.dot_dimension_numbers<[1], [0], [0], [1], [0, 0, 1, 1], [], []>} : vector<4x3xf32>, vector<3x32xf32>, vector<4x32xf32> -> vector<4x32xf32>
    %c0_11 = arith.constant 0 : index
    %c0_12 = arith.constant 0 : index
    %18 = vector.load %arg5[%c0_11, %c0_12] : memref<32x32xf32, #tpu.memory_space<vmem>>, vector<32x32xf32>
    %cst_13 = arith.constant dense<0.000000e+00> : vector<4x32xf32>
    %19 = tpu.matmul %17, %18, %cst_13 {dimension_numbers = #tpu.dot_dimension_numbers<[1], [0], [0], [1], [0, 0, 1, 1], [], []>} : vector<4x32xf32>, vector<32x32xf32>, vector<4x32xf32> -> vector<4x32xf32>
    %c0_14 = arith.constant 0 : index
    %c0_15 = arith.constant 0 : index
    %c0_16 = arith.constant 0 : index
    %20 = vector.load %arg2[%c0_14, %c0_15, %c0_16] : memref<1x4x32xf32, #tpu.memory_space<vmem>>, vector<1x4x32xf32>
    %21 = vector.shape_cast %20 : vector<1x4x32xf32> to vector<4x32xf32>
    %c0_17 = arith.constant 0 : index
    %c0_18 = arith.constant 0 : index
    %22 = vector.load %arg6[%c0_17, %c0_18] : memref<4x32xf32, #tpu.memory_space<vmem>>, vector<4x32xf32>
    %23 = arith.mulf %19, %19 : vector<4x32xf32>
    %24 = vector.shape_cast %23 : vector<4x32xf32> to vector<1x4x32xf32>
    %cst_19 = arith.constant dense<0.000000e+00> : vector<1xf32>
    %25 = vector.multi_reduction <add>, %24, %cst_19 [1, 2] : vector<1x4x32xf32> to vector<1xf32>
    %26 = vector.shape_cast %25 : vector<1xf32> to vector<1x1x1xf32>
    %27 = vector.extract %26[0, 0, 0] : f32 from vector<1x1x1xf32>
    %28 = vector.broadcast %27 : f32 to vector<1x1xf32>
    %cst_20 = arith.constant 1.280000e+02 : f32
    %29 = vector.broadcast %cst_20 : f32 to vector<1x1xf32>
    %30 = arith.divf %28, %29 : vector<1x1xf32>
    %cst_21 = arith.constant 1.1920929E-7 : f32
    %31 = vector.broadcast %cst_21 : f32 to vector<1x1xf32>
    %32 = arith.addf %30, %31 : vector<1x1xf32>
    %33 = math.rsqrt %32 : vector<1x1xf32>
    %34 = vector.broadcast %33 : vector<1x1xf32> to vector<4x32xf32>
    %35 = arith.mulf %19, %34 : vector<4x32xf32>
    %36 = arith.mulf %35, %22 : vector<4x32xf32>
    %37 = arith.addf %21, %36 : vector<4x32xf32>
    %c0_22 = arith.constant 0 : index
    %c0_23 = arith.constant 0 : index
    %38 = vector.load %arg7[%c0_22, %c0_23] : memref<4x32xf32, #tpu.memory_space<vmem>>, vector<4x32xf32>
    %39 = arith.mulf %37, %37 : vector<4x32xf32>
    %40 = vector.shape_cast %39 : vector<4x32xf32> to vector<1x4x32xf32>
    %cst_24 = arith.constant dense<0.000000e+00> : vector<1xf32>
    %41 = vector.multi_reduction <add>, %40, %cst_24 [1, 2] : vector<1x4x32xf32> to vector<1xf32>
    %42 = vector.shape_cast %41 : vector<1xf32> to vector<1x1x1xf32>
    %43 = vector.extract %42[0, 0, 0] : f32 from vector<1x1x1xf32>
    %44 = vector.broadcast %43 : f32 to vector<1x1xf32>
    %cst_25 = arith.constant 1.280000e+02 : f32
    %45 = vector.broadcast %cst_25 : f32 to vector<1x1xf32>
    %46 = arith.divf %44, %45 : vector<1x1xf32>
    %cst_26 = arith.constant 1.1920929E-7 : f32
    %47 = vector.broadcast %cst_26 : f32 to vector<1x1xf32>
    %48 = arith.addf %46, %47 : vector<1x1xf32>
    %49 = math.rsqrt %48 : vector<1x1xf32>
    %50 = vector.broadcast %49 : vector<1x1xf32> to vector<4x32xf32>
    %51 = arith.mulf %37, %50 : vector<4x32xf32>
    %52 = arith.mulf %51, %38 : vector<4x32xf32>
    %c0_27 = arith.constant 0 : index
    %c0_28 = arith.constant 0 : index
    %c0_29 = arith.constant 0 : index
    %53 = vector.load %arg8[%c0_27, %c0_28, %c0_29] : memref<1x4x32xf32, #tpu.memory_space<vmem>>, vector<1x4x32xf32>
    %54 = vector.shape_cast %53 : vector<1x4x32xf32> to vector<4x32xf32>
    %55 = vector.shape_cast %52 : vector<4x32xf32> to vector<1x4x32xf32>
    tpu.vector_store %arg8[%c0_27, %c0_28, %c0_29], %55 {strides = array<i32>} : memref<1x4x32xf32, #tpu.memory_space<vmem>>, vector<1x4x32xf32>,
    return
  }
  func.func @transform_0(%arg0: i32) -> (i32, i32, i32) {
    %c0_i32 = arith.constant 0 : i32
    %c0_i32_0 = arith.constant 0 : i32
    %c0_i32_1 = arith.constant 0 : i32
    return %arg0, %c0_i32, %c0_i32_0 : i32, i32, i32
  }
  func.func @transform_1(%arg0: i32) -> (i32, i32, i32) {
    %c0_i32 = arith.constant 0 : i32
    %c0_i32_0 = arith.constant 0 : i32
    %c0_i32_1 = arith.constant 0 : i32
    return %arg0, %c0_i32, %c0_i32_0 : i32, i32, i32
  }
  func.func @transform_2(%arg0: i32) -> (i32, i32) {
    %c0_i32 = arith.constant 0 : i32
    %c0_i32_0 = arith.constant 0 : i32
    %c0_i32_1 = arith.constant 0 : i32
    return %c0_i32, %c0_i32_0 : i32, i32
  }
  func.func @transform_3(%arg0: i32) -> (i32, i32) {
    %c0_i32 = arith.constant 0 : i32
    %c0_i32_0 = arith.constant 0 : i32
    %c0_i32_1 = arith.constant 0 : i32
    return %c0_i32, %c0_i32_0 : i32, i32
  }
  func.func @transform_4(%arg0: i32) -> (i32, i32) {
    %c0_i32 = arith.constant 0 : i32
    %c0_i32_0 = arith.constant 0 : i32
    %c0_i32_1 = arith.constant 0 : i32
    return %c0_i32, %c0_i32_0 : i32, i32
  }
  func.func @transform_5(%arg0: i32) -> (i32, i32) {
    %c0_i32 = arith.constant 0 : i32
    %c0_i32_0 = arith.constant 0 : i32
    %c0_i32_1 = arith.constant 0 : i32
    return %c0_i32, %c0_i32_0 : i32, i32
  }
  func.func @transform_6(%arg0: i32) -> (i32, i32) {
    %c0_i32 = arith.constant 0 : i32
    %c0_i32_0 = arith.constant 0 : i32
    %c0_i32_1 = arith.constant 0 : i32
    return %c0_i32, %c0_i32_0 : i32, i32
  }
  func.func @transform_7(%arg0: i32) -> (i32, i32, i32) {
    %c0_i32 = arith.constant 0 : i32
    %c0_i32_0 = arith.constant 0 : i32
    %c0_i32_1 = arith.constant 0 : i32
    return %arg0, %c0_i32, %c0_i32_0 : i32, i32, i32
  }
}

</mosaic_0001>

<llo_original>
// kernel: tpu_custom_call.1
$region0: #{tpu_custom_call.1}
  #allocation0 [shape = 'u32[]', space=smem, size = 0x4, offset = 0x4, fixed_abs, tag = 'smem constant byte address 0x4 - core index']
  #allocation1 [shape = 'u32[144,128]{1,0:T(1,128)}', space=vmem, size = 0x12000, scoped, tag = 'internal scratch']
  %s0 = inlined_call_operand.vmem [shape: f32[2,3,256], index: 0, kind: input, shape index: {}]
  %s1 = inlined_call_operand.vmem [shape: f32[2,4,32], index: 1, kind: input, shape index: {}]
  %s2 = inlined_call_operand.vmem [shape: f32[4,32], index: 2, kind: input, shape index: {}]
  %s3 = inlined_call_operand.vmem [shape: f32[256,32], index: 3, kind: input, shape index: {}]
  %s4 = inlined_call_operand.vmem [shape: f32[32,32], index: 4, kind: input, shape index: {}]
  %s5 = inlined_call_operand.vmem [shape: f32[4,32], index: 5, kind: input, shape index: {}]
  %s6 = inlined_call_operand.vmem [shape: f32[4,32], index: 6, kind: input, shape index: {}]
  %s7 = inlined_call_operand.hbm [shape: f32[2,4,32], index: 7, kind: output, shape index: {}]
  %s8 = sld [smem:[#allocation0]]
  $region61: #{tpu_custom_call.1} parent=0
    _
  %s10 = ssub.s32 1, %s8
  %s11 = scalar_select 0, %s10, %s8
  $region1: #{tpu_custom_call.1} parent=0
    #allocation2 [shape = 'u8[4096]{0}', space=vmem, size = 0x1000, scoped, tag = 'output window, operand 0']
    #allocation3 [shape = 's32[2]{0}', space=sflag, size = 0x8, scoped, tag = 'scoped memory for tpu_custom_call.1']
    %12 = vsyncpa [#allocation3], 0
    %s13 = scalar_lea.sflag [#allocation3], 1
    %14 = vsyncpa %s13, 0
    loop: start=0, step=1, limit=4
    $region2: #{tpu_custom_call.1} parent=1 // loop_pre_header
      _
    $region3: #{tpu_custom_call.1} parent=1 // loop_header
      %s16 = sphi 0, %s20
      %p17 = scmp.ge.s32.totalorder %s16, 4
      %s26 = sphi 0, %s28
      %s29 = sphi 0, %s26
      %s30 = sphi 0, %s29
      %s46 = sphi 0, %s30
      %s52 = sphi 0, %s54
      %s55 = sphi 0, %s52
      %s56 = sphi 0, %s55
      %s72 = sphi 0, %s56
      %s76 = sphi 0, %s76
      %s78 = sphi 0, %s76
      %s79 = sphi 0, %s78
      %s93 = sphi 0, %s79
      %s97 = sphi 0, %s97
      %s99 = sphi 0, %s97
      %s100 = sphi 0, %s99
      %s114 = sphi 0, %s100
      %s118 = sphi 0, %s118
      %s120 = sphi 0, %s118
      %s121 = sphi 0, %s120
      %s135 = sphi 0, %s121
      %s139 = sphi 0, %s139
      %s141 = sphi 0, %s139
      %s142 = sphi 0, %s141
      %s156 = sphi 0, %s142
      %s160 = sphi 0, %s160
      %s162 = sphi 0, %s160
      %s163 = sphi 0, %s162
      %s177 = sphi 0, %s163
      %s183 = sphi 0, %s185
      %s186 = sphi 0, %s183
      %s187 = sphi 0, %s186
      %s203 = sphi 0, %s187
    $region4: #{tpu_custom_call.1} parent=1 // loop_header_branch
      %19 = sbr.rel (%p17) target = $region8
    $region5: #{tpu_custom_call.1} parent=1 // loop_body
      %s21 = ssub.s32 %s16, 1
      %s22 = ssub.s32 %s16, 2
      %s23 = sadd.s32 %s16, 1
      %s24 = ssub.s32 %s16, %s23
      %p25 = scmp.eq.s32.totalorder %s24, 0
      %s27 = sadd.s32 %s26, 1
      %s28 = scalar_select %p25, %s26, %s27
      %p31 = pneg %p25
      %p32 = scmp.eq.s32.totalorder %s16, 1
      %p33 = por %p31, %p32
      %p34 = scmp.ne.s32.totalorder %s26, %s29
      %p35 = scmp.eq.s32.totalorder %s16, 0
      %p36 = por %p34, %p35
      %p37 = scmp.ne.s32.totalorder %s26, %s29
      %p38 = scmp.eq.s32.totalorder %s21, 1
      %p39 = por %p37, %p38
      %p40 = scmp.ne.s32.totalorder %s29, %s30
      %p41 = scmp.eq.s32.totalorder %s21, 0
      %p42 = por %p40, %p41
      %p43 = scmp.ne.s32.totalorder %s29, %s30
      %p44 = scmp.eq.s32.totalorder %s22, 1
      %p45 = por %p43, %p44
      %p47 = scmp.ne.s32.totalorder %s30, %s46
      %p48 = scmp.eq.s32.totalorder %s22, 0
      %p49 = por %p47, %p48
      %s50 = ssub.s32 %s16, %s23
      %p51 = scmp.eq.s32.totalorder %s50, 0
      %s53 = sadd.s32 %s52, 1
      %s54 = scalar_select %p51, %s52, %s53
      %p57 = pneg %p51
      %p58 = scmp.eq.s32.totalorder %s16, 1
      %p59 = por %p57, %p58
      %p60 = scmp.ne.s32.totalorder %s52, %s55
      %p61 = scmp.eq.s32.totalorder %s16, 0
      %p62 = por %p60, %p61
      %p63 = scmp.ne.s32.totalorder %s52, %s55
      %p64 = scmp.eq.s32.totalorder %s21, 1
      %p65 = por %p63, %p64
      %p66 = scmp.ne.s32.totalorder %s55, %s56
      %p67 = scmp.eq.s32.totalorder %s21, 0
      %p68 = por %p66, %p67
      %p69 = scmp.ne.s32.totalorder %s55, %s56
      %p70 = scmp.eq.s32.totalorder %s22, 1
      %p71 = por %p69, %p70
      %p73 = scmp.ne.s32.totalorder %s56, %s72
      %p74 = scmp.eq.s32.totalorder %s22, 0
      %p75 = por %p73, %p74
      %s77 = sadd.s32 %s76, 1
      %p80 = scmp.eq.s32.totalorder %s16, 1
      %p81 = scmp.ne.s32.totalorder %s76, %s78
      %p82 = scmp.eq.s32.totalorder %s16, 0
      %p83 = por %p81, %p82
      %p84 = scmp.ne.s32.totalorder %s76, %s78
      %p85 = scmp.eq.s32.totalorder %s21, 1
      %p86 = por %p84, %p85
      %p87 = scmp.ne.s32.totalorder %s78, %s79
      %p88 = scmp.eq.s32.totalorder %s21, 0
      %p89 = por %p87, %p88
      %p90 = scmp.ne.s32.totalorder %s78, %s79
      %p91 = scmp.eq.s32.totalorder %s22, 1
      %p92 = por %p90, %p91
      %p94 = scmp.ne.s32.totalorder %s79, %s93
      %p95 = scmp.eq.s32.totalorder %s22, 0
      %p96 = por %p94, %p95
      %s98 = sadd.s32 %s97, 1
      %p101 = scmp.eq.s32.totalorder %s16, 1
      %p102 = scmp.ne.s32.totalorder %s97, %s99
      %p103 = scmp.eq.s32.totalorder %s16, 0
      %p104 = por %p102, %p103
      %p105 = scmp.ne.s32.totalorder %s97, %s99
      %p106 = scmp.eq.s32.totalorder %s21, 1
      %p107 = por %p105, %p106
      %p108 = scmp.ne.s32.totalorder %s99, %s100
      %p109 = scmp.eq.s32.totalorder %s21, 0
      %p110 = por %p108, %p109
      %p111 = scmp.ne.s32.totalorder %s99, %s100
      %p112 = scmp.eq.s32.totalorder %s22, 1
      %p113 = por %p111, %p112
      %p115 = scmp.ne.s32.totalorder %s100, %s114
      %p116 = scmp.eq.s32.totalorder %s22, 0
      %p117 = por %p115, %p116
      %s119 = sadd.s32 %s118, 1
      %p122 = scmp.eq.s32.totalorder %s16, 1
      %p123 = scmp.ne.s32.totalorder %s118, %s120
      %p124 = scmp.eq.s32.totalorder %s16, 0
      %p125 = por %p123, %p124
      %p126 = scmp.ne.s32.totalorder %s118, %s120
      %p127 = scmp.eq.s32.totalorder %s21, 1
      %p128 = por %p126, %p127
      %p129 = scmp.ne.s32.totalorder %s120, %s121
      %p130 = scmp.eq.s32.totalorder %s21, 0
      %p131 = por %p129, %p130
      %p132 = scmp.ne.s32.totalorder %s120, %s121
      %p133 = scmp.eq.s32.totalorder %s22, 1
      %p134 = por %p132, %p133
      %p136 = scmp.ne.s32.totalorder %s121, %s135
      %p137 = scmp.eq.s32.totalorder %s22, 0
      %p138 = por %p136, %p137
      %s140 = sadd.s32 %s139, 1
      %p143 = scmp.eq.s32.totalorder %s16, 1
      %p144 = scmp.ne.s32.totalorder %s139, %s141
      %p145 = scmp.eq.s32.totalorder %s16, 0
      %p146 = por %p144, %p145
      %p147 = scmp.ne.s32.totalorder %s139, %s141
      %p148 = scmp.eq.s32.totalorder %s21, 1
      %p149 = por %p147, %p148
      %p150 = scmp.ne.s32.totalorder %s141, %s142
      %p151 = scmp.eq.s32.totalorder %s21, 0
      %p152 = por %p150, %p151
      %p153 = scmp.ne.s32.totalorder %s141, %s142
      %p154 = scmp.eq.s32.totalorder %s22, 1
      %p155 = por %p153, %p154
      %p157 = scmp.ne.s32.totalorder %s142, %s156
      %p158 = scmp.eq.s32.totalorder %s22, 0
      %p159 = por %p157, %p158
      %s161 = sadd.s32 %s160, 1
      %p164 = scmp.eq.s32.totalorder %s16, 1
      %p165 = scmp.ne.s32.totalorder %s160, %s162
      %p166 = scmp.eq.s32.totalorder %s16, 0
      %p167 = por %p165, %p166
      %p168 = scmp.ne.s32.totalorder %s160, %s162
      %p169 = scmp.eq.s32.totalorder %s21, 1
      %p170 = por %p168, %p169
      %p171 = scmp.ne.s32.totalorder %s162, %s163
      %p172 = scmp.eq.s32.totalorder %s21, 0
      %p173 = por %p171, %p172
      %p174 = scmp.ne.s32.totalorder %s162, %s163
      %p175 = scmp.eq.s32.totalorder %s22, 1
      %p176 = por %p174, %p175
      %p178 = scmp.ne.s32.totalorder %s163, %s177
      %p179 = scmp.eq.s32.totalorder %s22, 0
      %p180 = por %p178, %p179
      %s181 = ssub.s32 %s16, %s23
      %p182 = scmp.eq.s32.totalorder %s181, 0
      %s184 = sadd.s32 %s183, 1
      %s185 = scalar_select %p182, %s183, %s184
      %p188 = pneg %p182
      %p189 = scmp.eq.s32.totalorder %s16, 1
      %p190 = por %p188, %p189
      %p191 = scmp.ne.s32.totalorder %s183, %s186
      %p192 = scmp.eq.s32.totalorder %s16, 0
      %p193 = por %p191, %p192
      %p194 = scmp.ne.s32.totalorder %s183, %s186
      %p195 = scmp.eq.s32.totalorder %s21, 1
      %p196 = por %p194, %p195
      %p197 = scmp.ne.s32.totalorder %s186, %s187
      %p198 = scmp.eq.s32.totalorder %s21, 0
      %p199 = por %p197, %p198
      %p200 = scmp.ne.s32.totalorder %s186, %s187
      %p201 = scmp.eq.s32.totalorder %s22, 1
      %p202 = por %p200, %p201
      %p204 = scmp.ne.s32.totalorder %s187, %s203
      %p205 = scmp.eq.s32.totalorder %s22, 0
      %p206 = por %p204, %p205
      %p207 = scmp.le.s32.totalorder 1, %s16
      %p208 = scmp.lt.s32.totalorder %s16, 3
      %p209 = pnand %p207, %p208
      %p210 = pneg %p209
      // Predicated region
      $region9: #{tpu_custom_call.1} parent=5 // pred_check
        _
      $region10: #{tpu_custom_call.1} parent=5 // pred_check_branch
        %212 = sbr.rel (%p209) target = $region12
      $region11: #{tpu_custom_call.1} parent=5 // pred_region
        %s213 = ssub.s32 %s16, 1
        // Predicated region
        $region13: #{tpu_custom_call.1} parent=11 // pred_check
          %p214 = pneg %p89
        $region14: #{tpu_custom_call.1} parent=11 // pred_check_branch
          %216 = sbr.rel (%p214) target = $region16
        $region15: #{tpu_custom_call.1} parent=11 // pred_region
          _
        $region16: #{tpu_custom_call.1} parent=11 // pred_fallthru
          _
        // Predicated region
        $region17: #{tpu_custom_call.1} parent=11 // pred_check
          %p217 = pneg %p110
        $region18: #{tpu_custom_call.1} parent=11 // pred_check_branch
          %219 = sbr.rel (%p217) target = $region20
        $region19: #{tpu_custom_call.1} parent=11 // pred_region
          _
        $region20: #{tpu_custom_call.1} parent=11 // pred_fallthru
          _
        // Predicated region
        $region21: #{tpu_custom_call.1} parent=11 // pred_check
          %p220 = pneg %p131
        $region22: #{tpu_custom_call.1} parent=11 // pred_check_branch
          %222 = sbr.rel (%p220) target = $region24
        $region23: #{tpu_custom_call.1} parent=11 // pred_region
          _
        $region24: #{tpu_custom_call.1} parent=11 // pred_fallthru
          _
        // Predicated region
        $region25: #{tpu_custom_call.1} parent=11 // pred_check
          %p223 = pneg %p152
        $region26: #{tpu_custom_call.1} parent=11 // pred_check_branch
          %225 = sbr.rel (%p223) target = $region28
        $region27: #{tpu_custom_call.1} parent=11 // pred_region
          _
        $region28: #{tpu_custom_call.1} parent=11 // pred_fallthru
          _
        // Predicated region
        $region29: #{tpu_custom_call.1} parent=11 // pred_check
          %p226 = pneg %p173
        $region30: #{tpu_custom_call.1} parent=11 // pred_check_branch
          %228 = sbr.rel (%p226) target = $region32
        $region31: #{tpu_custom_call.1} parent=11 // pred_region
          _
        $region32: #{tpu_custom_call.1} parent=11 // pred_fallthru
          _
      $region12: #{tpu_custom_call.1} parent=5 // pred_fallthru
        _
      %p229 = scmp.lt.s32.totalorder %s16, 2
      // Predicated region
      $region33: #{tpu_custom_call.1} parent=5 // pred_check
        %p230 = pneg %p229
      $region34: #{tpu_custom_call.1} parent=5 // pred_check_branch
        %232 = sbr.rel (%p230) target = $region36
      $region35: #{tpu_custom_call.1} parent=5 // pred_region
        // Predicated region
        $region37: #{tpu_custom_call.1} parent=35 // pred_check
          %p233 = pneg %p36
        $region38: #{tpu_custom_call.1} parent=35 // pred_check_branch
          %235 = sbr.rel (%p233) target = $region40
        $region39: #{tpu_custom_call.1} parent=35 // pred_region
          %p236 = scmp.lt.s32.totalorder %s16, 1
          %s237 = scalar_select %p236, %s16, 1
          %s238 = smul.addr %s237, 2
          %s239 = smul.addr %s238, 4
          %s240 = scalar_lea.vmem %s0, %s239
        $region40: #{tpu_custom_call.1} parent=35 // pred_fallthru
          _
        // Predicated region
        $region41: #{tpu_custom_call.1} parent=35 // pred_check
          %p241 = pneg %p62
        $region42: #{tpu_custom_call.1} parent=35 // pred_check_branch
          %243 = sbr.rel (%p241) target = $region44
        $region43: #{tpu_custom_call.1} parent=35 // pred_region
          %p244 = scmp.lt.s32.totalorder %s16, 1
          %s245 = scalar_select %p244, %s16, 1
          %s246 = smul.addr %s245, 4
          %s247 = scalar_lea.vmem %s1, %s246
        $region44: #{tpu_custom_call.1} parent=35 // pred_fallthru
          _
      $region36: #{tpu_custom_call.1} parent=5 // pred_fallthru
        _
      %p248 = scmp.le.s32.totalorder 1, %s16
      %p249 = scmp.lt.s32.totalorder %s16, 3
      %p250 = pnand %p248, %p249
      %p251 = pneg %p250
      // Predicated region
      $region45: #{tpu_custom_call.1} parent=5 // pred_check
        _
      $region46: #{tpu_custom_call.1} parent=5 // pred_check_branch
        %253 = sbr.rel (%p250) target = $region48
      $region47: #{tpu_custom_call.1} parent=5 // pred_region
        %s254 = ssub.s32 %s16, 1
        %p255 = scmp.lt.s32.totalorder %s21, 1
        %s256 = scalar_select %p255, %s21, 1
        %s257 = smul.addr %s256, 2
        %s258 = smul.addr %s257, 4
        %s259 = scalar_lea.vmem %s0, %s258
        %p260 = pneg %p42
        %p261 = pneg %p39
        %p262 = scmp.lt.s32.totalorder %s21, 1
        %s263 = scalar_select %p262, %s21, 1
        %s264 = smul.addr %s263, 4
        %s265 = scalar_lea.vmem %s1, %s264
        %p266 = pneg %p68
        %p267 = pneg %p65
        %p268 = pneg %p89
        %p269 = pneg %p86
        %p270 = pneg %p110
        %p271 = pneg %p107
        %p272 = pneg %p131
        %p273 = pneg %p128
        %p274 = pneg %p152
        %p275 = pneg %p149
        %p276 = pneg %p173
        %p277 = pneg %p170
        %p278 = pneg %p199
        %p279 = pneg %p196
        %s280 = sand.u32 %s186, 1
        %s281 = scalar_lea.sflag [#allocation3], %s280
        %s282 = sand.u32 %s186, 1
        %s283 = smul.addr %s282, 4
        %s284 = scalar_lea.vmem [#allocation2], %s283
        %p285 = scmp.lt.s32.totalorder %s21, 1
        %s286 = scalar_select %p285, %s21, 1
        %s287 = smul.addr %s286, 2
        %s288 = smul.addr %s287, 4
        %s289 = scalar_lea.vmem %s0, %s288
        %p290 = scmp.lt.s32.totalorder %s21, 1
        %s291 = scalar_select %p290, %s21, 1
        %s292 = smul.addr %s291, 4
        %s293 = scalar_lea.vmem %s1, %s292
        %v294 = vld [vmem:[%s289] sm:$0x77]
        %v295 = vld [vmem:[%s3] sm:$0xff]
        %v296 = vld [vmem:[%s3 + $0x8] sm:$0xff]
        %v297 = vld [vmem:[%s3 + $0x10] sm:$0xff]
        %v298 = vld [vmem:[%s3 + $0x18] sm:$0xff]
        %v299 = vld [vmem:[%s3 + $0x20] sm:$0xff]
        %v300 = vld [vmem:[%s3 + $0x28] sm:$0xff]
        %v301 = vld [vmem:[%s3 + $0x30] sm:$0xff]
        %v302 = vld [vmem:[%s3 + $0x38] sm:$0xff]
        %v303 = vld [vmem:[%s3 + $0x40] sm:$0xff]
        %v304 = vld [vmem:[%s3 + $0x48] sm:$0xff]
        %v305 = vld [vmem:[%s3 + $0x50] sm:$0xff]
        %v306 = vld [vmem:[%s3 + $0x58] sm:$0xff]
        %v307 = vld [vmem:[%s3 + $0x60] sm:$0xff]
        %v308 = vld [vmem:[%s3 + $0x68] sm:$0xff]
        %v309 = vld [vmem:[%s3 + $0x70] sm:$0xff]
        %v310 = vld [vmem:[%s3 + $0x78] sm:$0xff]
        %v311 = vld [vmem:[%s3 + $0x80] sm:$0xff]
        %v312 = vld [vmem:[%s3 + $0x88] sm:$0xff]
        %v313 = vld [vmem:[%s3 + $0x90] sm:$0xff]
        %v314 = vld [vmem:[%s3 + $0x98] sm:$0xff]
        %v315 = vld [vmem:[%s3 + $0xa0] sm:$0xff]
        %v316 = vld [vmem:[%s3 + $0xa8] sm:$0xff]
        %v317 = vld [vmem:[%s3 + $0xb0] sm:$0xff]
        %v318 = vld [vmem:[%s3 + $0xb8] sm:$0xff]
        %v319 = vld [vmem:[%s3 + $0xc0] sm:$0xff]
        %v320 = vld [vmem:[%s3 + $0xc8] sm:$0xff]
        %v321 = vld [vmem:[%s3 + $0xd0] sm:$0xff]
        %v322 = vld [vmem:[%s3 + $0xd8] sm:$0xff]
        %v323 = vld [vmem:[%s3 + $0xe0] sm:$0xff]
        %v324 = vld [vmem:[%s3 + $0xe8] sm:$0xff]
        %v325 = vld [vmem:[%s3 + $0xf0] sm:$0xff]
        %v326 = vld [vmem:[%s3 + $0xf8] sm:$0xff]
        %v328 = vcombine.high %v294, %v294
        %330 = vmatprep.subr.mxu0 0.0
        %331 = vmatpush1.msra.mxu0 %v310
        %332 = vmatprep.subr.mxu0 0.0
        %333 = vmatpush1.msra.mxu0 %v309
        %334 = vmatprep.subr.mxu0 0.0
        %335 = vmatpush1.msra.mxu0 %v308
        %336 = vmatprep.subr.mxu0 0.0
        %337 = vmatpush1.msra.mxu0 %v307
        %338 = vmatprep.subr.mxu0 0.0
        %339 = vmatpush1.msra.mxu0 %v306
        %340 = vmatprep.subr.mxu0 0.0
        %341 = vmatpush1.msra.mxu0 %v305
        %342 = vmatprep.subr.mxu0 0.0
        %343 = vmatpush1.msra.mxu0 %v304
        %344 = vmatprep.subr.mxu0 0.0
        %345 = vmatpush1.msra.mxu0 %v303
        %346 = vmatprep.subr.mxu0 0.0
        %347 = vmatpush1.msra.mxu0 %v302
        %348 = vmatprep.subr.mxu0 0.0
        %349 = vmatpush1.msra.mxu0 %v301
        %350 = vmatprep.subr.mxu0 0.0
        %351 = vmatpush1.msra.mxu0 %v300
        %352 = vmatprep.subr.mxu0 0.0
        %353 = vmatpush1.msra.mxu0 %v299
        %354 = vmatprep.subr.mxu0 0.0
        %355 = vmatpush1.msra.mxu0 %v298
        %356 = vmatprep.subr.mxu0 0.0
        %357 = vmatpush1.msra.mxu0 %v297
        %358 = vmatprep.subr.mxu0 0.0
        %359 = vmatpush1.msra.mxu0 %v296
        %360 = vmatprep.subr.mxu0 0.0
        %361 = vmatpush1.msra.mxu0 %v295
        %362 = vmatprep.subr.mxu0 0.0
        %363 = vmatpush2.msra.mxu0 %v326
        %364 = vmatprep.subr.mxu0 0.0
        %365 = vmatpush2.msra.mxu0 %v325
        %366 = vmatprep.subr.mxu0 0.0
        %367 = vmatpush2.msra.mxu0 %v324
        %368 = vmatprep.subr.mxu0 0.0
        %369 = vmatpush2.msra.mxu0 %v323
        %370 = vmatprep.subr.mxu0 0.0
        %371 = vmatpush2.msra.mxu0 %v322
        %372 = vmatprep.subr.mxu0 0.0
        %373 = vmatpush2.msra.mxu0 %v321
        %374 = vmatprep.subr.mxu0 0.0
        %375 = vmatpush2.msra.mxu0 %v320
        %376 = vmatprep.subr.mxu0 0.0
        %377 = vmatpush2.msra.mxu0 %v319
        %378 = vmatprep.subr.mxu0 0.0
        %379 = vmatpush2.msra.mxu0 %v318
        %380 = vmatprep.subr.mxu0 0.0
        %381 = vmatpush2.msra.mxu0 %v317
        %382 = vmatprep.subr.mxu0 0.0
        %383 = vmatpush2.msra.mxu0 %v316
        %384 = vmatprep.subr.mxu0 0.0
        %385 = vmatpush2.msra.mxu0 %v315
        %386 = vmatprep.subr.mxu0 0.0
        %387 = vmatpush2.msra.mxu0 %v314
        %388 = vmatprep.subr.mxu0 0.0
        %389 = vmatpush2.msra.mxu0 %v313
        %390 = vmatprep.subr.mxu0 0.0
        %391 = vmatpush2.msra.mxu0 %v312
        %392 = vmatprep.subr.mxu0 0.0
        %393 = vmatpush2.msra.mxu0 %v311
        %394 = vmatprep.mubr.f32.mxu0 %v328
        %395 = vmatmul.mubr.f32.gmra.mxu0 %v294
        %v396 = vpop.f32.mrf.mxu0
        %v397 = vadd.f32 0.0, %v396
        %v398 = vpop.f32.mrf.mxu0
        %399 = vdwg.mxu0
        %v400 = vld [vmem:[%s2] sm:$0xf]
        %vm401 = vcmask 261120
        %v403 = vsel %vm401, %v400, 0
        %v406 = vsel %vm401, %v397, 0
        %408 = vmatprep.subr.mxu0 0.0
        %409 = vmatpush1.xpose.msra.mxu0 0.0
        %410 = vmatprep.subr.mxu0 0.0
        %411 = vmatpush1.xpose.msra.mxu0 0.0
        %412 = vmatprep.subr.mxu0 0.0
        %413 = vmatpush1.xpose.msra.mxu0 0.0
        %414 = vmatprep.subr.mxu0 0.0
        %415 = vmatpush1.xpose.msra.mxu0 0.0
        %416 = vmatprep.subr.mxu0 0.0
        %417 = vmatpush1.xpose.msra.mxu0 0.0
        %418 = vmatprep.subr.mxu0 0.0
        %419 = vmatpush1.xpose.msra.mxu0 0.0
        %420 = vmatprep.subr.mxu0 0.0
        %421 = vmatpush1.xpose.msra.mxu0 0.0
        %422 = vmatprep.subr.mxu0 0.0
        %423 = vmatpush1.xpose.msra.mxu0 0.0
        %424 = vmatprep.subr.mxu0 0.0
        %425 = vmatpush1.xpose.msra.mxu0 0.0
        %426 = vmatprep.subr.mxu0 0.0
        %427 = vmatpush1.xpose.msra.mxu0 0.0
        %428 = vmatprep.subr.mxu0 0.0
        %429 = vmatpush1.xpose.msra.mxu0 0.0
        %430 = vmatprep.subr.mxu0 0.0
        %431 = vmatpush1.xpose.msra.mxu0 0.0
        %432 = vmatprep.subr.mxu0 0.0
        %433 = vmatpush1.xpose.msra.mxu0 0.0
        %434 = vmatprep.subr.mxu0 0.0
        %435 = vmatpush1.xpose.msra.mxu0 0.0
        %436 = vmatprep.subr.mxu0 0.0
        %437 = vmatpush1.xpose.msra.mxu0 0.0
        %438 = vmatprep.subr.mxu0 0.0
        %439 = vmatpush1.xpose.msra.mxu0 %v406
        %440 = vmatprep.subr.mxu0 0.0
        %441 = vmatpush2.xpose.msra.mxu0 0.0
        %442 = vmatprep.subr.mxu0 0.0
        %443 = vmatpush2.xpose.msra.mxu0 0.0
        %444 = vmatprep.subr.mxu0 0.0
        %445 = vmatpush2.xpose.msra.mxu0 0.0
        %446 = vmatprep.subr.mxu0 0.0
        %447 = vmatpush2.xpose.msra.mxu0 0.0
        %448 = vmatprep.subr.mxu0 0.0
        %449 = vmatpush2.xpose.msra.mxu0 0.0
        %450 = vmatprep.subr.mxu0 0.0
        %451 = vmatpush2.xpose.msra.mxu0 0.0
        %452 = vmatprep.subr.mxu0 0.0
        %453 = vmatpush2.xpose.msra.mxu0 0.0
        %454 = vmatprep.subr.mxu0 0.0
        %455 = vmatpush2.xpose.msra.mxu0 0.0
        %456 = vmatprep.subr.mxu0 0.0
        %457 = vmatpush2.xpose.msra.mxu0 0.0
        %458 = vmatprep.subr.mxu0 0.0
        %459 = vmatpush2.xpose.msra.mxu0 0.0
        %460 = vmatprep.subr.mxu0 0.0
        %461 = vmatpush2.xpose.msra.mxu0 0.0
        %462 = vmatprep.subr.mxu0 0.0
        %463 = vmatpush2.xpose.msra.mxu0 0.0
        %464 = vmatprep.subr.mxu0 0.0
        %465 = vmatpush2.xpose.msra.mxu0 0.0
        %466 = vmatprep.subr.mxu0 0.0
        %467 = vmatpush2.xpose.msra.mxu0 0.0
        %468 = vmatprep.subr.mxu0 0.0
        %469 = vmatpush2.xpose.msra.mxu0 0.0
        %470 = vmatprep.subr.mxu0 0.0
        %471 = vmatpush2.xpose.msra.mxu0 0.0
        %472 = vmatprep.mubr.f32.mxu0 0.0
        %473 = vmatmul.mubr.f32.gmra.mxu0 %v403
        %v474 = vpop.f32.mrf.mxu0
        %v475 = vadd.f32 0.0, %v474
        %v476 = vpop.f32.mrf.mxu0
        %477 = vdwg.mxu0
        %v478 = vmul.f32 %v475, 0.17677669
        %vm479 = vcmask 19456
        %v480 = vsel %vm479, %v478, -inf
        %481 = vmax.xlane.f32.xlu0 %v480
        %v482 = vpop.xlane.xlu0 %481
        %v483 = vsub.f32 %v478, %v482
        %v484 = vmul.f32 %v483, 1.442695
        %v485 = vpow.pop %v484
        %v486 = vsel %vm479, %v485, 0.0
        %487 = vadd.xlane.f32.xlu0 %v486
        %v488 = vpop.xlane.xlu0 %487
        %v489 = vrcp.pop %v488
        %v490 = vmul.f32 %v485, %v489
        %vm491 = vcmask 23552
        %v493 = vsel %vm491, %v490, 0
        %vm495 = vcmask 1042432
        %v496 = vsel %vm495, %v397, 0
        %498 = vmatprep.subr.mxu0 0.0
        %499 = vmatpush1.msra.mxu0 0.0
        %500 = vmatprep.subr.mxu0 0.0
        %501 = vmatpush1.msra.mxu0 0.0
        %502 = vmatprep.subr.mxu0 0.0
        %503 = vmatpush1.msra.mxu0 0.0
        %504 = vmatprep.subr.mxu0 0.0
        %505 = vmatpush1.msra.mxu0 0.0
        %506 = vmatprep.subr.mxu0 0.0
        %507 = vmatpush1.msra.mxu0 0.0
        %508 = vmatprep.subr.mxu0 0.0
        %509 = vmatpush1.msra.mxu0 0.0
        %510 = vmatprep.subr.mxu0 0.0
        %511 = vmatpush1.msra.mxu0 0.0
        %512 = vmatprep.subr.mxu0 0.0
        %513 = vmatpush1.msra.mxu0 0.0
        %514 = vmatprep.subr.mxu0 0.0
        %515 = vmatpush1.msra.mxu0 0.0
        %516 = vmatprep.subr.mxu0 0.0
        %517 = vmatpush1.msra.mxu0 0.0
        %518 = vmatprep.subr.mxu0 0.0
        %519 = vmatpush1.msra.mxu0 0.0
        %520 = vmatprep.subr.mxu0 0.0
        %521 = vmatpush1.msra.mxu0 0.0
        %522 = vmatprep.subr.mxu0 0.0
        %523 = vmatpush1.msra.mxu0 0.0
        %524 = vmatprep.subr.mxu0 0.0
        %525 = vmatpush1.msra.mxu0 0.0
        %526 = vmatprep.subr.mxu0 0.0
        %527 = vmatpush1.msra.mxu0 0.0
        %528 = vmatprep.subr.mxu0 0.0
        %529 = vmatpush1.msra.mxu0 %v496
        %530 = vmatprep.subr.mxu0 0.0
        %531 = vmatpush2.msra.mxu0 0.0
        %532 = vmatprep.subr.mxu0 0.0
        %533 = vmatpush2.msra.mxu0 0.0
        %534 = vmatprep.subr.mxu0 0.0
        %535 = vmatpush2.msra.mxu0 0.0
        %536 = vmatprep.subr.mxu0 0.0
        %537 = vmatpush2.msra.mxu0 0.0
        %538 = vmatprep.subr.mxu0 0.0
        %539 = vmatpush2.msra.mxu0 0.0
        %540 = vmatprep.subr.mxu0 0.0
        %541 = vmatpush2.msra.mxu0 0.0
        %542 = vmatprep.subr.mxu0 0.0
        %543 = vmatpush2.msra.mxu0 0.0
        %544 = vmatprep.subr.mxu0 0.0
        %545 = vmatpush2.msra.mxu0 0.0
        %546 = vmatprep.subr.mxu0 0.0
        %547 = vmatpush2.msra.mxu0 0.0
        %548 = vmatprep.subr.mxu0 0.0
        %549 = vmatpush2.msra.mxu0 0.0
        %550 = vmatprep.subr.mxu0 0.0
        %551 = vmatpush2.msra.mxu0 0.0
        %552 = vmatprep.subr.mxu0 0.0
        %553 = vmatpush2.msra.mxu0 0.0
        %554 = vmatprep.subr.mxu0 0.0
        %555 = vmatpush2.msra.mxu0 0.0
        %556 = vmatprep.subr.mxu0 0.0
        %557 = vmatpush2.msra.mxu0 0.0
        %558 = vmatprep.subr.mxu0 0.0
        %559 = vmatpush2.msra.mxu0 0.0
        %560 = vmatprep.subr.mxu0 0.0
        %561 = vmatpush2.msra.mxu0 0.0
        %562 = vmatprep.mubr.f32.mxu0 0.0
        %563 = vmatmul.mubr.f32.gmra.mxu0 %v493
        %v564 = vpop.f32.mrf.mxu0
        %v565 = vadd.f32 0.0, %v564
        %v566 = vpop.f32.mrf.mxu0
        %567 = vdwg.mxu0
        %v568 = vld [vmem:[%s4] sm:$0xff]
        %v569 = vld [vmem:[%s4 + $0x8] sm:$0xff]
        %v570 = vld [vmem:[%s4 + $0x10] sm:$0xff]
        %v571 = vld [vmem:[%s4 + $0x18] sm:$0xff]
        %v573 = vsel %vm401, %v565, 0
        %575 = vmatprep.subr.mxu0 0.0
        %576 = vmatpush1.msra.mxu0 0.0
        %577 = vmatprep.subr.mxu0 0.0
        %578 = vmatpush1.msra.mxu0 0.0
        %579 = vmatprep.subr.mxu0 0.0
        %580 = vmatpush1.msra.mxu0 0.0
        %581 = vmatprep.subr.mxu0 0.0
        %582 = vmatpush1.msra.mxu0 0.0
        %583 = vmatprep.subr.mxu0 0.0
        %584 = vmatpush1.msra.mxu0 0.0
        %585 = vmatprep.subr.mxu0 0.0
        %586 = vmatpush1.msra.mxu0 0.0
        %587 = vmatprep.subr.mxu0 0.0
        %588 = vmatpush1.msra.mxu0 0.0
        %589 = vmatprep.subr.mxu0 0.0
        %590 = vmatpush1.msra.mxu0 0.0
        %591 = vmatprep.subr.mxu0 0.0
        %592 = vmatpush1.msra.mxu0 0.0
        %593 = vmatprep.subr.mxu0 0.0
        %594 = vmatpush1.msra.mxu0 0.0
        %595 = vmatprep.subr.mxu0 0.0
        %596 = vmatpush1.msra.mxu0 0.0
        %597 = vmatprep.subr.mxu0 0.0
        %598 = vmatpush1.msra.mxu0 0.0
        %599 = vmatprep.subr.mxu0 0.0
        %600 = vmatpush1.msra.mxu0 %v571
        %601 = vmatprep.subr.mxu0 0.0
        %602 = vmatpush1.msra.mxu0 %v570
        %603 = vmatprep.subr.mxu0 0.0
        %604 = vmatpush1.msra.mxu0 %v569
        %605 = vmatprep.subr.mxu0 0.0
        %606 = vmatpush1.msra.mxu0 %v568
        %607 = vmatprep.subr.mxu0 0.0
        %608 = vmatpush2.msra.mxu0 0.0
        %609 = vmatprep.subr.mxu0 0.0
        %610 = vmatpush2.msra.mxu0 0.0
        %611 = vmatprep.subr.mxu0 0.0
        %612 = vmatpush2.msra.mxu0 0.0
        %613 = vmatprep.subr.mxu0 0.0
        %614 = vmatpush2.msra.mxu0 0.0
        %615 = vmatprep.subr.mxu0 0.0
        %616 = vmatpush2.msra.mxu0 0.0
        %617 = vmatprep.subr.mxu0 0.0
        %618 = vmatpush2.msra.mxu0 0.0
        %619 = vmatprep.subr.mxu0 0.0
        %620 = vmatpush2.msra.mxu0 0.0
        %621 = vmatprep.subr.mxu0 0.0
        %622 = vmatpush2.msra.mxu0 0.0
        %623 = vmatprep.subr.mxu0 0.0
        %624 = vmatpush2.msra.mxu0 0.0
        %625 = vmatprep.subr.mxu0 0.0
        %626 = vmatpush2.msra.mxu0 0.0
        %627 = vmatprep.subr.mxu0 0.0
        %628 = vmatpush2.msra.mxu0 0.0
        %629 = vmatprep.subr.mxu0 0.0
        %630 = vmatpush2.msra.mxu0 0.0
        %631 = vmatprep.subr.mxu0 0.0
        %632 = vmatpush2.msra.mxu0 0.0
        %633 = vmatprep.subr.mxu0 0.0
        %634 = vmatpush2.msra.mxu0 0.0
        %635 = vmatprep.subr.mxu0 0.0
        %636 = vmatpush2.msra.mxu0 0.0
        %637 = vmatprep.subr.mxu0 0.0
        %638 = vmatpush2.msra.mxu0 0.0
        %639 = vmatprep.mubr.f32.mxu0 0.0
        %640 = vmatmul.mubr.f32.gmra.mxu0 %v573
        %v641 = vpop.f32.mrf.mxu0
        %v642 = vadd.f32 0.0, %v641
        %v643 = vpop.f32.mrf.mxu0
        %644 = vdwg.mxu0
        %v645 = vld [vmem:[%s293] sm:$0xf]
        %v646 = vld [vmem:[%s5] sm:$0xf]
        %v647 = vmul.f32 %v642, %v642
        %vm648 = vcmask 257024
        %v649 = vsel %vm648, %v647, 0.0
        %650 = vadd.xlane.f32.xlu0 %v649
        %v651 = vpop.xlane.xlu0 %650
        %v652 = vrot.slane %v651, 4
        %v653 = vadd.f32 %v651, %v652
        %v654 = vrot.slane %v653, 2
        %v655 = vadd.f32 %v653, %v654
        %v656 = vrot.slane %v655, 1
        %v657 = vadd.f32 %v655, %v656
        %s658 = vtos %v657
        %v659 = vstv %s658
        %v660 = vrcp.pop 128.0
        %v661 = vmul.f32 %v659, %v660
        %v662 = vadd.f32 %v661, 1.1920929e-07
        %v663 = vrsqrt.pop %v662
        %v664 = vmul.f32 %v642, %v663
        %v665 = vmul.f32 %v664, %v646
        %v666 = vadd.f32 %v645, %v665
        %v667 = vld [vmem:[%s6] sm:$0xf]
        %v668 = vmul.f32 %v666, %v666
        %v669 = vsel %vm648, %v668, 0.0
        %670 = vadd.xlane.f32.xlu0 %v669
        %v671 = vpop.xlane.xlu0 %670
        %v672 = vrot.slane %v671, 4
        %v673 = vadd.f32 %v671, %v672
        %v674 = vrot.slane %v673, 2
        %v675 = vadd.f32 %v673, %v674
        %v676 = vrot.slane %v675, 1
        %v677 = vadd.f32 %v675, %v676
        %s678 = vtos %v677
        %v679 = vstv %s678
        %v680 = vmul.f32 %v679, %v660
        %v681 = vadd.f32 %v680, 1.1920929e-07
        %v682 = vrsqrt.pop %v681
        %v683 = vmul.f32 %v666, %v682
        %v684 = vmul.f32 %v683, %v667
        %685 = vst.msk [vmem:[%s284] sm:$0xf] %vm648, %v684
        %s686 = sand.u32 %s186, 1
        %s687 = scalar_lea.sflag [#allocation3], %s686
        %s688 = sand.u32 %s186, 1
        %s689 = smul.addr %s688, 4
        %s690 = scalar_lea.vmem [#allocation2], %s689
        // Predicated region
        $region49: #{tpu_custom_call.1} parent=47 // pred_check
          %p691 = pneg %p196
        $region50: #{tpu_custom_call.1} parent=47 // pred_check_branch
          %693 = sbr.rel (%p691) target = $region52
        $region51: #{tpu_custom_call.1} parent=47 // pred_region
          %s695 = ssub.s32 64, 64
          %696 = vsyncadd %s687, %s695
          %s697 = smul.addr %s21, 64
          %s698 = scalar_lea.hbm %s7, %s697
          %s700 = sshll.u32 %s690, 4
          %s701 = int_to_ptr.vmem [resolvable:$true] %s700
          %703 = dma.vmem_to_hbm [thread:$0]  %s701, 64, %s698, %s687
        $region52: #{tpu_custom_call.1} parent=47 // pred_fallthru
          _
      $region48: #{tpu_custom_call.1} parent=5 // pred_fallthru
        _
      %p704 = scmp.le.s32.totalorder 2, %s16
      // Predicated region
      $region53: #{tpu_custom_call.1} parent=5 // pred_check
        %p705 = pneg %p704
      $region54: #{tpu_custom_call.1} parent=5 // pred_check_branch
        %707 = sbr.rel (%p705) target = $region56
      $region55: #{tpu_custom_call.1} parent=5 // pred_region
        %s708 = ssub.s32 %s16, 2
        // Predicated region
        $region57: #{tpu_custom_call.1} parent=55 // pred_check
          %p709 = pneg %p202
        $region58: #{tpu_custom_call.1} parent=55 // pred_check_branch
          %711 = sbr.rel (%p709) target = $region60
        $region59: #{tpu_custom_call.1} parent=55 // pred_region
          %s712 = sand.u32 %s187, 1
          %s713 = scalar_lea.sflag [#allocation3], %s712
          %s714 = sand.u32 %s187, 1
          %s715 = smul.addr %s714, 4
          %s716 = scalar_lea.vmem [#allocation2], %s715
          %717 = dma.done %s713, 64
        $region60: #{tpu_custom_call.1} parent=55 // pred_fallthru
          _
      $region56: #{tpu_custom_call.1} parent=5 // pred_fallthru
        _
    $region6: #{tpu_custom_call.1} parent=1 // loop_footer
      %s20 = sadd.s32 1, %s16
    $region7: #{tpu_custom_call.1} parent=1 // loop_footer_branch
      %15 = sbr.rel target = $region3
    $region8: #{tpu_custom_call.1} parent=1 // loop_exit
      _
    %718 = vsyncpa [#allocation3], 1
    %s719 = scalar_lea.sflag [#allocation3], 1
    %720 = vsyncpa %s719, 1

</llo_original>
